<compile_context>
chip_gen: v7x
topology: tpu7x:2x2x1
jax: 0.10.0
libtpu: 0.0.40
codegen_flags: <defaults>
</compile_context>

<pallas_src>
import jax
import jax.numpy as jnp
from jax.experimental import pallas as pl
from jax.experimental.pallas import tpu as pltpu


def _perm_lane_gather_kernel(perm_ref, x_ref, out_ref):
    # perm_ref: (1, D) int32, VMEM-resident.  x_ref / out_ref: (tb, D) tiles.
    x = x_ref[...]
    idx = jnp.broadcast_to(perm_ref[...], x.shape)  # sublane broadcast, cheap
    # Lane-axis gather on the VMEM block (XLU slot) — indices are guaranteed
    # in [0, D), so promise_in_bounds avoids any clip/fill wrapper ops.
    out_ref[...] = jnp.take_along_axis(x, idx, axis=-1, mode="promise_in_bounds")


def _pick_block_rows(batch, dim, itemsize):
    """Rows per grid step: whole array if small, else ~1 MiB lane-dense tiles."""
    total_bytes = batch * dim * itemsize
    if total_bytes <= (1 << 20) or batch <= 16:
        # Small-problem fast path: one grid step, block == full array (always a
        # legal block shape, no per-step overhead).
        return batch
    # ~1 MiB input tile, rows a multiple of 8 (sublane), and at least 2 blocks
    # so the parallel grid axis can be split across v7x's two TensorCores.
    rows = max(8, ((1 << 20) // max(dim * itemsize, 1)) // 8 * 8)
    rows = min(rows, max(8, (batch // 2) // 8 * 8))
    return rows


def random_permutation_forward(x, perm, *, block_rows=None):
    """Forward pass of RandomPermutation: returns (x[:, perm], zeros(B))."""
    B, D = x.shape
    perm2d = perm.astype(jnp.int32).reshape(1, D)

    tb = block_rows if block_rows is not None else _pick_block_rows(
        B, D, x.dtype.itemsize)
    nb = pl.cdiv(B, tb)  # ragged B handled by Pallas boundary masking

    out = pl.pallas_call(
        _perm_lane_gather_kernel,
        out_shape=jax.ShapeDtypeStruct((B, D), x.dtype),
        grid=(nb,),
        in_specs=[
            # perm: fetched once, resident across all grid steps.
            pl.BlockSpec((1, D), lambda i: (0, 0)),
            # x: lane-dense (tb, D) tile in the native [B, D] layout.
            pl.BlockSpec((tb, D), lambda i: (i, 0)),
        ],
        out_specs=pl.BlockSpec((tb, D), lambda i: (i, 0)),
        compiler_params=pltpu.CompilerParams(
            dimension_semantics=("parallel",)),
    )(perm2d, x)

    # log|det J| of a permutation is exactly 0 for every batch element;
    # produced in the wrapper (compile-time constant), not in the kernel.
    logdet = jnp.zeros((B,), jnp.float32)
    return out, logdet


def random_permutation_inverse(z, inv_perm, *, block_rows=None):
    """Inverse pass: identical kernel, driven by the inverse permutation."""
    return random_permutation_forward(z, inv_perm, block_rows=block_rows)


if __name__ == "__main__":
    key = jax.random.PRNGKey(0)
    k_perm, k_x, k_x2 = jax.random.split(key, 3)

    D = 32  # matches the module's feature dim

    # Deterministic "buffer" initialization, mirroring torch.randperm(dim).
    perm = jax.random.permutation(k_perm, D)
    inv_perm = jnp.argsort(perm)

    # --- small shape: single-grid-step fast path -----------------------------
    B = 8
    x = jax.random.normal(k_x, (B, D), dtype=jnp.float32)

    out, logdet = random_permutation_forward(x, perm)
    out = jax.block_until_ready(out)
    logdet = jax.block_until_ready(logdet)

    ref_out = x[:, perm]
    assert out.shape == (B, D) and out.dtype == x.dtype
    assert logdet.shape == (B,) and logdet.dtype == jnp.float32
    assert jnp.array_equal(out, ref_out)          # exact: pure data movement
    assert jnp.all(logdet == 0.0)

    # Round-trip through the inverse recovers x exactly.
    z, _ = random_permutation_inverse(out, inv_perm)
    assert jnp.array_equal(jax.block_until_ready(z), x)

    # --- tiled path: force a small block so the multi-step pipeline runs -----
    B2 = 24
    x2 = jax.random.normal(k_x2, (B2, D), dtype=jnp.float32)
    out2, _ = random_permutation_forward(x2, perm, block_rows=8)  # grid = (3,)
    assert jnp.array_equal(jax.block_until_ready(out2), x2[:, perm])

    print("KERNEL_OK")
</pallas_src>

<mosaic_0001>
module attributes {stable_mosaic.version = 11 : i64} {
  func.func @_perm_lane_gather_kernel(%arg0: i32, %arg1: memref<1x32xi32, #tpu.memory_space<vmem>>, %arg2: memref<8x32xf32, #tpu.memory_space<vmem>>, %arg3: memref<8x32xf32, #tpu.memory_space<vmem>>) attributes {dimension_semantics = [#tpu.dimension_semantics<parallel>], iteration_bounds = array<i64: 1>, scalar_prefetch = 0 : i64, scratch_operands = 0 : i64, tpu.core_type = #tpu.core_type<tc>, window_params = [{pipeline_mode = #tpu.pipeline_mode<synchronous>, transform_indices = @transform_0, window_bounds = array<i64: 1, 32>}, {transform_indices = @transform_1, window_bounds = array<i64: 8, 32>}, {transform_indices = @transform_2, window_bounds = array<i64: 8, 32>}]} {
    %c0 = arith.constant 0 : index
    %c0_0 = arith.constant 0 : index
    %0 = vector.load %arg2[%c0, %c0_0] : memref<8x32xf32, #tpu.memory_space<vmem>>, vector<8x32xf32>
    %c0_1 = arith.constant 0 : index
    %c0_2 = arith.constant 0 : index
    %1 = vector.load %arg1[%c0_1, %c0_2] : memref<1x32xi32, #tpu.memory_space<vmem>>, vector<1x32xi32>
    %2 = vector.shape_cast %1 : vector<1x32xi32> to vector<1x32xi32>
    %3 = vector.broadcast %2 : vector<1x32xi32> to vector<8x32xi32>
    %4 = vector.shape_cast %3 : vector<8x32xi32> to vector<8x32x1xi32>
    %5 = vector.shape_cast %4 : vector<8x32x1xi32> to vector<8x32xi32>
    %6 = tpu.dynamic_gather %0[%5] in [1] : vector<8x32xf32>, vector<8x32xi32> -> vector<8x32xf32>
    %c0_3 = arith.constant 0 : index
    %c0_4 = arith.constant 0 : index
    %7 = vector.load %arg3[%c0_3, %c0_4] : memref<8x32xf32, #tpu.memory_space<vmem>>, vector<8x32xf32>
    tpu.vector_store %arg3[%c0_3, %c0_4], %6 {strides = array<i32>} : memref<8x32xf32, #tpu.memory_space<vmem>>, vector<8x32xf32>,
    return
  }
  func.func @transform_0(%arg0: i32) -> (i32, i32) {
    %c0_i32 = arith.constant 0 : i32
    %c0_i32_0 = arith.constant 0 : i32
    %c0_i32_1 = arith.constant 0 : i32
    return %c0_i32, %c0_i32_0 : i32, i32
  }
  func.func @transform_1(%arg0: i32) -> (i32, i32) {
    %c0_i32 = arith.constant 0 : i32
    %c0_i32_0 = arith.constant 0 : i32
    return %arg0, %c0_i32 : i32, i32
  }
  func.func @transform_2(%arg0: i32) -> (i32, i32) {
    %c0_i32 = arith.constant 0 : i32
    %c0_i32_0 = arith.constant 0 : i32
    return %arg0, %c0_i32 : i32, i32
  }
}

</mosaic_0001>

<llo_original>
// kernel: tpu_custom_call.1
$region0: #{tpu_custom_call.1}
  #allocation0 [shape = 'u32[]', space=smem, size = 0x4, offset = 0x4, fixed_abs, tag = 'smem constant byte address 0x4 - core index']
  #allocation1 [shape = 'u32[144,128]{1,0:T(1,128)}', space=vmem, size = 0x12000, scoped, tag = 'internal scratch']
  %s0 = inlined_call_operand.hbm [shape: s32[1,32], index: 0, kind: input, shape index: {}]
  %s1 = inlined_call_operand.hbm [shape: f32[8,32], index: 1, kind: input, shape index: {}]
  %s2 = inlined_call_operand.hbm [shape: f32[8,32], index: 2, kind: output, shape index: {}]
  %s3 = sld [smem:[#allocation0]]
  $region26: #{tpu_custom_call.1} parent=0
    _
  %s5 = ssub.s32 1, %s3
  %s6 = scalar_select 0, %s5, %s3
  $region1: #{tpu_custom_call.1} parent=0
    #allocation2 [shape = 'u8[512]{0}', space=vmem, size = 0x400, scoped, tag = 'input window, operand 0, single buffered']
    #allocation3 [shape = 's32[1]{0}', space=sflag, size = 0x4, scoped, tag = 'scoped memory for tpu_custom_call.1']
    #allocation4 [shape = 's32[1]{0}', space=sflag, size = 0x4, scoped, tag = 'scoped memory for tpu_custom_call.1']
    #allocation5 [shape = 'u8[4096]{0}', space=vmem, size = 0x1000, scoped, tag = 'input window, operand 1, single buffered']
    #allocation6 [shape = 's32[1]{0}', space=sflag, size = 0x4, scoped, tag = 'scoped memory for tpu_custom_call.1']
    #allocation7 [shape = 'u8[4096]{0}', space=vmem, size = 0x1000, scoped, tag = 'output window, operand 0, single buffered']
    %7 = vsyncpa [#allocation3], 0
    %8 = vsyncpa [#allocation6], 0
    %9 = vsyncpa [#allocation4], 0
    // Predicated region
    $region2: #{tpu_custom_call.1} parent=1 // pred_check
      _
    $region3: #{tpu_custom_call.1} parent=1 // pred_check_branch
      %11 = sbr.rel (0) target = $region5
    $region4: #{tpu_custom_call.1} parent=1 // pred_region
      %s13 = ssub.s32 16, 16
      %14 = vsyncadd [#allocation3], %s13
      %s16 = sshll.u32 [#allocation2], 4
      %s17 = int_to_ptr.vmem [resolvable:$true] %s16
      %19 = dma.hbm_to_vmem [thread:$0]  %s0, 16, %s17, [#allocation3]
    $region5: #{tpu_custom_call.1} parent=1 // pred_fallthru
      _
    // Predicated region
    $region6: #{tpu_custom_call.1} parent=1 // pred_check
      _
    $region7: #{tpu_custom_call.1} parent=1 // pred_check_branch
      %21 = sbr.rel (0) target = $region9
    $region8: #{tpu_custom_call.1} parent=1 // pred_region
      %s23 = ssub.s32 128, 128
      %24 = vsyncadd [#allocation6], %s23
      %s26 = sshll.u32 [#allocation5], 4
      %s27 = int_to_ptr.vmem [resolvable:$true] %s26
      %29 = dma.hbm_to_vmem [thread:$0]  %s1, 128, %s27, [#allocation6]
    $region9: #{tpu_custom_call.1} parent=1 // pred_fallthru
      _
    // Predicated region
    $region10: #{tpu_custom_call.1} parent=1 // pred_check
      _
    $region11: #{tpu_custom_call.1} parent=1 // pred_check_branch
      %31 = sbr.rel (0) target = $region13
    $region12: #{tpu_custom_call.1} parent=1 // pred_region
      %32 = dma.done [#allocation3], 16
    $region13: #{tpu_custom_call.1} parent=1 // pred_fallthru
      _
    // Predicated region
    $region14: #{tpu_custom_call.1} parent=1 // pred_check
      _
    $region15: #{tpu_custom_call.1} parent=1 // pred_check_branch
      %34 = sbr.rel (0) target = $region17
    $region16: #{tpu_custom_call.1} parent=1 // pred_region
      %35 = dma.done [#allocation6], 128
    $region17: #{tpu_custom_call.1} parent=1 // pred_fallthru
      _
    %v36 = vld [vmem:[#allocation5] sm:$0xff]
    %v37 = vld [vmem:[#allocation2] sm:$0x1]
    %v38 = vlaneseq
    %v39 = vshrl.u32 %v38, 7
    %v40 = vsub.s32 0, %v39
    %v41 = vrot.slane %v37, %v40
    %42 = vset.pattern.permute.xlu0 %v41
    %43 = vperm.xlu0 %42, %v36
    %v44 = vpop.permute.xlu0 %43
    %vm45 = vcmask 261120
    %46 = vst.msk [vmem:[#allocation7] sm:$0xff] %vm45, %v44
    // Predicated region
    $region18: #{tpu_custom_call.1} parent=1 // pred_check
      _
    $region19: #{tpu_custom_call.1} parent=1 // pred_check_branch
      %48 = sbr.rel (0) target = $region21
    $region20: #{tpu_custom_call.1} parent=1 // pred_region
      %s50 = ssub.s32 128, 128
      %51 = vsyncadd [#allocation4], %s50
      %s53 = sshll.u32 [#allocation7], 4
      %s54 = int_to_ptr.vmem [resolvable:$true] %s53
      %56 = dma.vmem_to_hbm [thread:$0]  %s54, 128, %s2, [#allocation4]
    $region21: #{tpu_custom_call.1} parent=1 // pred_fallthru
      _
    // Predicated region
    $region22: #{tpu_custom_call.1} parent=1 // pred_check
      _
    $region23: #{tpu_custom_call.1} parent=1 // pred_check_branch
      %58 = sbr.rel (0) target = $region25
    $region24: #{tpu_custom_call.1} parent=1 // pred_region
      %59 = dma.done [#allocation4], 128
    $region25: #{tpu_custom_call.1} parent=1 // pred_fallthru
      _
    %60 = vsyncpa [#allocation3], 1
    %61 = vsyncpa [#allocation6], 1
    %62 = vsyncpa [#allocation4], 1

</llo_original>
